<compile_context>
chip_gen: v6e
topology: v6e:2x2x1
jax: 0.10.0
libtpu: 0.0.40
codegen_flags: <defaults>
</compile_context>

<pallas_src>
import jax
import jax.numpy as jnp
from jax import lax
from jax.experimental import pallas as pl

BOS = 2  # lib.Constants.BOS


# ----------------------------------------------------------------------------
# Pallas kernels
# ----------------------------------------------------------------------------
def _bidir_encoder_kernel(emb_ref,
                          wih_f_ref, whh_f_ref, bf_ref,
                          wih_b_ref, whh_b_ref, bb_ref,
                          ctx_f_ref, ctx_b_ref,
                          hf_ref, cf_ref, hb_ref, cb_ref):
    """Fused bidirectional LSTM encoder.

    Single kernel invocation; time is an in-kernel lax.fori_loop (no per-step
    grid overhead).  Weights are pre-transposed to (in, 4*Hc) so each gate
    matmul feeds the MXU directly; the two directions issue two independent
    matmuls per step which keeps the MXU pipeline fuller.  Gate accumulation,
    h and c stay f32 regardless of the MXU operand dtype.
    """
    S = emb_ref.shape[0]
    B = emb_ref.shape[1]
    Hc = whh_f_ref.shape[0]
    f32 = jnp.float32

    wih_f = wih_f_ref[...]
    whh_f = whh_f_ref[...]
    b_f = bf_ref[...].astype(f32)
    wih_b = wih_b_ref[...]
    whh_b = whh_b_ref[...]
    b_b = bb_ref[...].astype(f32)
    mxu_dtype = whh_f.dtype

    def cell(x, h, c, w_ih, w_hh, b):
        g = (jnp.dot(x, w_ih, preferred_element_type=f32)
             + jnp.dot(h.astype(mxu_dtype), w_hh, preferred_element_type=f32)
             + b)
        i = jax.nn.sigmoid(g[:, 0 * Hc:1 * Hc])
        f = jax.nn.sigmoid(g[:, 1 * Hc:2 * Hc])
        gg = jnp.tanh(g[:, 2 * Hc:3 * Hc])
        o = jax.nn.sigmoid(g[:, 3 * Hc:4 * Hc])
        c_new = f * c + i * gg
        h_new = o * jnp.tanh(c_new)
        return h_new, c_new

    def body(t, carry):
        hf, cf, hb, cb = carry
        xf = emb_ref[t]                     # (B, E)
        xb = emb_ref[S - 1 - t]             # (B, E)  backward direction
        hf, cf = cell(xf, hf, cf, wih_f, whh_f, b_f)
        hb, cb = cell(xb, hb, cb, wih_b, whh_b, b_b)
        ctx_f_ref[t] = hf.astype(ctx_f_ref.dtype)
        ctx_b_ref[S - 1 - t] = hb.astype(ctx_b_ref.dtype)   # stored un-flipped
        return hf, cf, hb, cb

    zero = jnp.zeros((B, Hc), f32)
    hf, cf, hb, cb = lax.fori_loop(0, S, body, (zero, zero, zero, zero))
    hf_ref[...] = hf
    cf_ref[...] = cf
    hb_ref[...] = hb
    cb_ref[...] = cb
    # TODO(synk): on v7x the two independent directions could be split across
    # the 2 TensorCores (size-2 'parallel' grid axis / core_map) for ~2x.


def _attn_decoder_kernel(emb_ref, h0_ref, c0_ref, out0_ref,
                         ctx_ref, ctxp_ref,
                         we_ref, wf_ref, whh_ref, b_ref,
                         woc_ref, woh_ref,
                         out_ref):
    """Input-feeding LSTM decoder with Luong global (dot) attention.

    Single invocation; time is an in-kernel lax.fori_loop.  No concatenations:
    gates = emb@W_e + out_prev@W_feed + h@W_hh + b, and the attention output is
    tanh(weighted@W_out_c + h@W_out_h).  The attention input projection was
    hoisted out of the loop (ctxp = ctx @ W_in precomputed in the wrapper).
    Decoder dropout is identity at eval time.
    """
    T = emb_ref.shape[0]
    B = emb_ref.shape[1]
    H = whh_ref.shape[0]
    f32 = jnp.float32

    w_e = we_ref[...]
    w_feed = wf_ref[...]
    w_hh = whh_ref[...]
    b = b_ref[...].astype(f32)
    w_out_c = woc_ref[...]
    w_out_h = woh_ref[...]
    ctx = ctx_ref[...]                      # (B, S, D)
    ctxp = ctxp_ref[...]                    # (B, S, D) == ctx @ W_in
    mxu_dtype = w_hh.dtype

    # MXU-friendly batched contractions for real batch sizes; VPU broadcast+
    # reduce form for tiny B (demo sizes) where the batched matmul degenerates.
    use_mxu_attn = B >= 8
    if not use_mxu_attn:                    # hoist casts out of the loop
        ctx_v = ctx.astype(f32)
        ctxp_v = ctxp.astype(f32)

    def body(t, carry):
        h, c, o_prev = carry
        emb = emb_ref[t]                                            # (B, E)
        g = (jnp.dot(emb, w_e, preferred_element_type=f32)
             + jnp.dot(o_prev.astype(mxu_dtype), w_feed,
                       preferred_element_type=f32)
             + jnp.dot(h.astype(mxu_dtype), w_hh,
                       preferred_element_type=f32)
             + b)
        i = jax.nn.sigmoid(g[:, 0 * H:1 * H])
        f = jax.nn.sigmoid(g[:, 1 * H:2 * H])
        gg = jnp.tanh(g[:, 2 * H:3 * H])
        og = jax.nn.sigmoid(g[:, 3 * H:4 * H])
        c_new = f * c + i * gg
        h_new = og * jnp.tanh(c_new)
        h_m = h_new.astype(mxu_dtype)

        # Luong global attention over the encoder context.
        if use_mxu_attn:
            scores = lax.dot_general(                                # (B, S)
                h_m, ctxp, (((1,), (2,)), ((0,), (0,))),
                preferred_element_type=f32)
        else:
            scores = jnp.sum(ctxp_v * h_new[:, None, :], axis=-1)
        scores = scores - jnp.max(scores, axis=-1, keepdims=True)
        e = jnp.exp(scores)
        attn = e * pl.reciprocal(jnp.sum(e, axis=-1, keepdims=True),
                                 approx=True)
        if use_mxu_attn:
            weighted = lax.dot_general(                              # (B, D)
                attn.astype(mxu_dtype), ctx, (((1,), (1,)), ((0,), (0,))),
                preferred_element_type=f32)
        else:
            weighted = jnp.sum(attn[:, :, None] * ctx_v, axis=1)

        out = jnp.tanh(
            jnp.dot(weighted.astype(mxu_dtype), w_out_c,
                    preferred_element_type=f32)
            + jnp.dot(h_m, w_out_h, preferred_element_type=f32))
        out_ref[t] = out.astype(out_ref.dtype)
        return h_new, c_new, out

    lax.fori_loop(0, T, body, (h0_ref[...], c0_ref[...], out0_ref[...]))
    # TODO(synk): for production sizes on v7x (64 MiB VMEM) tile the attention
    # over the source length (online-softmax over S chunks) instead of keeping
    # the full (B,S,D) context resident.


# ----------------------------------------------------------------------------
# pallas_call wrappers (no grid: whole arrays resident in VMEM, single call)
# ----------------------------------------------------------------------------
def run_encoder(src_emb, p):
    """src_emb: (S, B, E) -> (ctx_f, ctx_b, h_f, c_f, h_b, c_b)."""
    S, B, _ = src_emb.shape
    Hc = p["enc_w_hh_f"].shape[0]           # pre-transposed (Hc, 4Hc)
    dt = src_emb.dtype
    return pl.pallas_call(
        _bidir_encoder_kernel,
        out_shape=(
            jax.ShapeDtypeStruct((S, B, Hc), dt),         # forward context
            jax.ShapeDtypeStruct((S, B, Hc), dt),         # backward context
            jax.ShapeDtypeStruct((B, Hc), jnp.float32),   # h_fwd final
            jax.ShapeDtypeStruct((B, Hc), jnp.float32),   # c_fwd final
            jax.ShapeDtypeStruct((B, Hc), jnp.float32),   # h_bwd final
            jax.ShapeDtypeStruct((B, Hc), jnp.float32),   # c_bwd final
        ),
    )(src_emb,
      p["enc_w_ih_f"], p["enc_w_hh_f"], p["enc_b_f"],
      p["enc_w_ih_b"], p["enc_w_hh_b"], p["enc_b_b"])


def run_decoder(emb_seq, h0, c0, out0, ctx, ctx_proj, p):
    """emb_seq: (T, B, E) -> decoder outputs (T, B, H) float32."""
    T, B, _ = emb_seq.shape
    H = h0.shape[-1]
    return pl.pallas_call(
        _attn_decoder_kernel,
        out_shape=jax.ShapeDtypeStruct((T, B, H), jnp.float32),
    )(emb_seq, h0, c0, out0, ctx, ctx_proj,
      p["dec_w_emb"], p["dec_w_feed"], p["dec_w_hh"], p["dec_b"],
      p["attn_w_out_c"], p["attn_w_out_h"])


# ----------------------------------------------------------------------------
# One-time parameter preparation: transpose / split / cast (model-load cost)
# ----------------------------------------------------------------------------
def prepare_params(p, mxu_dtype=jnp.float32):
    E = p["src_emb"].shape[1]
    dec_h = p["dec_w_hh"].shape[1]
    cast = lambda a: a.astype(mxu_dtype)
    return {
        "src_emb": cast(p["src_emb"]),
        "tgt_emb": cast(p["tgt_emb"]),
        # encoder weights, pre-transposed to (in, 4Hc); biases stay f32
        "enc_w_ih_f": cast(p["enc_w_ih_f"].T),
        "enc_w_hh_f": cast(p["enc_w_hh_f"].T),
        "enc_b_f": p["enc_b_f"],
        "enc_w_ih_b": cast(p["enc_w_ih_b"].T),
        "enc_w_hh_b": cast(p["enc_w_hh_b"].T),
        "enc_b_b": p["enc_b_b"],
        # decoder W_ih split into embedding / input-feed halves, pre-transposed
        "dec_w_emb": cast(p["dec_w_ih"][:, :E].T),        # (E, 4H)
        "dec_w_feed": cast(p["dec_w_ih"][:, E:].T),       # (H, 4H)
        "dec_w_hh": cast(p["dec_w_hh"].T),                # (H, 4H)
        "dec_b": p["dec_b"],
        # attention output linear split into the weighted-ctx / h halves
        "attn_w_out_c": cast(p["attn_w_out"][:, :dec_h].T),   # (H, H)
        "attn_w_out_h": cast(p["attn_w_out"][:, dec_h:].T),   # (H, H)
    }


# ----------------------------------------------------------------------------
# NMTModel.forward (regression=False)
# ----------------------------------------------------------------------------
def nmt_forward(params, src, tgt, mxu_dtype=jnp.float32):
    """src: (S, B) int32, tgt: (T, B) int32 -> decoder outputs (T, B, H) f32.

    `mxu_dtype` sets the dtype of MXU operands (weights, embeddings, context);
    use jnp.bfloat16 on v6e/v7x.  Accumulation, gates, cell state and softmax
    stay float32.
    """
    S, B = src.shape
    p = prepare_params(params, mxu_dtype)

    # encoder: embedding lookup (XLA glue) + fused bidirectional LSTM kernel
    src_emb = jnp.take(p["src_emb"], src, axis=0)                  # (S, B, E)
    ctx_f, ctx_b, hf, cf, hb, cb = run_encoder(src_emb, p)

    # _fix_enc_hidden for one bidirectional layer == feature concat
    h0 = jnp.concatenate([hf, hb], axis=-1)                        # (B, H)
    c0 = jnp.concatenate([cf, cb], axis=-1)
    init_output = jnp.zeros((B, h0.shape[-1]), jnp.float32)        # make_init_decoder_output

    # context.transpose(0, 1): (S, B, 2Hc) -> (B, S, D)
    context = jnp.concatenate([ctx_f, ctx_b], axis=-1)
    ctx_bsd = jnp.transpose(context, (1, 0, 2))

    # Hoisted attention input projection: score(h, ctx_s) = h . (ctx_s @ W_in)
    ctx_proj = jnp.einsum("bsd,dk->bsk", ctx_bsd.astype(jnp.float32),
                          params["attn_w_in"]).astype(mxu_dtype)
    ctx_bsd = ctx_bsd.astype(mxu_dtype)

    # initialize(): BOS embedding then teacher-forced target embeddings
    bos_emb = jnp.take(p["tgt_emb"], jnp.full((B,), BOS, jnp.int32), axis=0)
    tgt_emb = jnp.take(p["tgt_emb"], tgt, axis=0)
    emb_seq = jnp.concatenate([bos_emb[None], tgt_emb[:-1]], axis=0)  # (T,B,E)

    return run_decoder(emb_seq, h0, c0, init_output, ctx_bsd, ctx_proj, p)


# ----------------------------------------------------------------------------
# Pure-JAX reference (same math, no Pallas) for a sanity check
# ----------------------------------------------------------------------------
def _lstm_cell_ref(x, h, c, w_ih, w_hh, b, H):
    g = x @ w_ih.T + h @ w_hh.T + b
    i = jax.nn.sigmoid(g[:, :H]); f = jax.nn.sigmoid(g[:, H:2 * H])
    gg = jnp.tanh(g[:, 2 * H:3 * H]); o = jax.nn.sigmoid(g[:, 3 * H:])
    c = f * c + i * gg
    return o * jnp.tanh(c), c


def nmt_forward_ref(p, src, tgt):
    S, B = src.shape
    T = tgt.shape[0]
    Hc = p["enc_w_hh_f"].shape[1]
    H = 2 * Hc
    src_emb = jnp.take(p["src_emb"], src, axis=0)

    hf = cf = jnp.zeros((B, Hc)); ctx_f = []
    for t in range(S):
        hf, cf = _lstm_cell_ref(src_emb[t], hf, cf, p["enc_w_ih_f"],
                                p["enc_w_hh_f"], p["enc_b_f"], Hc)
        ctx_f.append(hf)
    hb = cb = jnp.zeros((B, Hc)); ctx_b = [None] * S
    for t in range(S - 1, -1, -1):
        hb, cb = _lstm_cell_ref(src_emb[t], hb, cb, p["enc_w_ih_b"],
                                p["enc_w_hh_b"], p["enc_b_b"], Hc)
        ctx_b[t] = hb
    context = jnp.stack([jnp.concatenate([ctx_f[t], ctx_b[t]], -1) for t in range(S)])
    h = jnp.concatenate([hf, hb], -1); c = jnp.concatenate([cf, cb], -1)
    out = jnp.zeros((B, H))
    ctx = jnp.transpose(context, (1, 0, 2))

    bos_emb = jnp.take(p["tgt_emb"], jnp.full((B,), BOS, jnp.int32), axis=0)
    tgt_emb = jnp.take(p["tgt_emb"], tgt, axis=0)
    emb_seq = jnp.concatenate([bos_emb[None], tgt_emb[:-1]], axis=0)

    outs = []
    for t in range(T):
        x = jnp.concatenate([emb_seq[t], out], axis=1)
        h, c = _lstm_cell_ref(x, h, c, p["dec_w_ih"], p["dec_w_hh"], p["dec_b"], H)
        q = h @ p["attn_w_in"].T
        scores = jnp.sum(ctx * q[:, None, :], axis=-1)
        attn = jax.nn.softmax(scores, axis=-1)
        weighted = jnp.sum(attn[:, :, None] * ctx, axis=1)
        out = jnp.tanh(jnp.concatenate([weighted, h], 1) @ p["attn_w_out"].T)
        outs.append(out)
    return jnp.stack(outs)


# ----------------------------------------------------------------------------
# Deterministic parameter construction (uniform(-0.1, 0.1), OpenNMT-style)
# ----------------------------------------------------------------------------
def make_params(key, vocab, emb, enc_h):
    dec_h = 2 * enc_h
    ks = jax.random.split(key, 16)
    u = lambda k, s: jax.random.uniform(k, s, jnp.float32, -0.1, 0.1)
    return {
        "src_emb": u(ks[0], (vocab, emb)),
        "tgt_emb": u(ks[1], (vocab, emb)),
        "enc_w_ih_f": u(ks[2], (4 * enc_h, emb)),
        "enc_w_hh_f": u(ks[3], (4 * enc_h, enc_h)),
        "enc_b_f": u(ks[4], (1, 4 * enc_h)),
        "enc_w_ih_b": u(ks[5], (4 * enc_h, emb)),
        "enc_w_hh_b": u(ks[6], (4 * enc_h, enc_h)),
        "enc_b_b": u(ks[7], (1, 4 * enc_h)),
        "dec_w_ih": u(ks[8], (4 * dec_h, emb + dec_h)),
        "dec_w_hh": u(ks[9], (4 * dec_h, dec_h)),
        "dec_b": u(ks[10], (1, 4 * dec_h)),
        "attn_w_in": u(ks[11], (dec_h, dec_h)),    # bias=False in GlobalAttention
        "attn_w_out": u(ks[12], (dec_h, 2 * dec_h)),
    }


# TODO(synk): translate()/sample() (greedy argmax / multinomial sampling with
# dynamic early-exit) and backward()/predict() (autograd + criterion) are
# host-side control flow around the same decoder step and are not kernels here.
# The generator projection is not applied in forward() when regression=False.

if __name__ == "__main__":
    VOCAB, EMB, ENC_H = 16, 32, 16      # dec hidden = 2 * ENC_H = 32
    S, T, B = 8, 8, 2

    params = make_params(jax.random.PRNGKey(42), VOCAB, EMB, ENC_H)
    kin = jax.random.PRNGKey(0)
    k_src, k_tgt = jax.random.split(kin)
    src = jax.random.randint(k_src, (S, B), 0, VOCAB, jnp.int32)
    tgt = jax.random.randint(k_tgt, (T, B), 0, VOCAB, jnp.int32)

    ref = jax.block_until_ready(nmt_forward_ref(params, src, tgt))

    # f32 MXU operands: strict check against the pure-JAX reference.
    out = jax.block_until_ready(nmt_forward(params, src, tgt,
                                            mxu_dtype=jnp.float32))
    assert out.shape == (T, B, 2 * ENC_H), out.shape
    assert bool(jnp.all(jnp.isfinite(out)))
    assert bool(jnp.allclose(out, ref, rtol=5e-2, atol=5e-2))

    # bf16 MXU operands (v6e/v7x fast path; accumulation + gate math stay f32).
    out_bf16 = jax.block_until_ready(nmt_forward(params, src, tgt,
                                                 mxu_dtype=jnp.bfloat16))
    assert bool(jnp.all(jnp.isfinite(out_bf16)))
    assert bool(jnp.allclose(out_bf16, ref, rtol=1e-1, atol=1e-1))

    print("KERNEL_OK")
</pallas_src>

<mosaic_0001>
module attributes {stable_mosaic.version = 11 : i64} {
  func.func @_bidir_encoder_kernel(%arg0: memref<8x2x32xf32, #tpu.memory_space<vmem>>, %arg1: memref<32x64xf32, #tpu.memory_space<vmem>>, %arg2: memref<16x64xf32, #tpu.memory_space<vmem>>, %arg3: memref<1x64xf32, #tpu.memory_space<vmem>>, %arg4: memref<32x64xf32, #tpu.memory_space<vmem>>, %arg5: memref<16x64xf32, #tpu.memory_space<vmem>>, %arg6: memref<1x64xf32, #tpu.memory_space<vmem>>, %arg7: memref<8x2x16xf32, #tpu.memory_space<vmem>>, %arg8: memref<8x2x16xf32, #tpu.memory_space<vmem>>, %arg9: memref<2x16xf32, #tpu.memory_space<vmem>>, %arg10: memref<2x16xf32, #tpu.memory_space<vmem>>, %arg11: memref<2x16xf32, #tpu.memory_space<vmem>>, %arg12: memref<2x16xf32, #tpu.memory_space<vmem>>) attributes {dimension_semantics = [], scalar_prefetch = 0 : i64, scratch_operands = 0 : i64, tpu.core_type = #tpu.core_type<tc>} {
    %c0 = arith.constant 0 : index
    %c0_0 = arith.constant 0 : index
    %0 = vector.load %arg1[%c0, %c0_0] : memref<32x64xf32, #tpu.memory_space<vmem>>, vector<32x64xf32>
    %c0_1 = arith.constant 0 : index
    %c0_2 = arith.constant 0 : index
    %1 = vector.load %arg2[%c0_1, %c0_2] : memref<16x64xf32, #tpu.memory_space<vmem>>, vector<16x64xf32>
    %c0_3 = arith.constant 0 : index
    %c0_4 = arith.constant 0 : index
    %2 = vector.load %arg3[%c0_3, %c0_4] : memref<1x64xf32, #tpu.memory_space<vmem>>, vector<1x64xf32>
    %c0_5 = arith.constant 0 : index
    %c0_6 = arith.constant 0 : index
    %3 = vector.load %arg4[%c0_5, %c0_6] : memref<32x64xf32, #tpu.memory_space<vmem>>, vector<32x64xf32>
    %c0_7 = arith.constant 0 : index
    %c0_8 = arith.constant 0 : index
    %4 = vector.load %arg5[%c0_7, %c0_8] : memref<16x64xf32, #tpu.memory_space<vmem>>, vector<16x64xf32>
    %c0_9 = arith.constant 0 : index
    %c0_10 = arith.constant 0 : index
    %5 = vector.load %arg6[%c0_9, %c0_10] : memref<1x64xf32, #tpu.memory_space<vmem>>, vector<1x64xf32>
    %cst = arith.constant 0.000000e+00 : f32
    %6 = vector.broadcast %cst : f32 to vector<2x16xf32>
    %c0_i32 = arith.constant 0 : i32
    %c8_i32 = arith.constant 8 : i32
    %7 = arith.addi %c0_i32, %c8_i32 : i32
    %c1_i32 = arith.constant 1 : i32
    %8:4 = scf.for %arg13 = %c0_i32 to %7 step %c1_i32 iter_args(%arg14 = %6, %arg15 = %6, %arg16 = %6, %arg17 = %6) -> (vector<2x16xf32>, vector<2x16xf32>, vector<2x16xf32>, vector<2x16xf32>)  : i32 {
      %13 = arith.index_cast %arg13 : i32 to index
      %c0_20 = arith.constant 0 : index
      %c0_21 = arith.constant 0 : index
      %14 = vector.load %arg0[%13, %c0_20, %c0_21] : memref<8x2x32xf32, #tpu.memory_space<vmem>>, vector<1x2x32xf32>
      %15 = vector.shape_cast %14 : vector<1x2x32xf32> to vector<2x32xf32>
      %c7_i32 = arith.constant 7 : i32
      %16 = arith.subi %c7_i32, %arg13 : i32
      %17 = arith.index_cast %16 : i32 to index
      %c0_22 = arith.constant 0 : index
      %c0_23 = arith.constant 0 : index
      %18 = vector.load %arg0[%17, %c0_22, %c0_23] : memref<8x2x32xf32, #tpu.memory_space<vmem>>, vector<1x2x32xf32>
      %19 = vector.shape_cast %18 : vector<1x2x32xf32> to vector<2x32xf32>
      %cst_24 = arith.constant dense<0.000000e+00> : vector<2x64xf32>
      %20 = tpu.matmul %15, %0, %cst_24 {dimension_numbers = #tpu.dot_dimension_numbers<[1], [0], [0], [1], [0, 0, 1, 1], [], []>} : vector<2x32xf32>, vector<32x64xf32>, vector<2x64xf32> -> vector<2x64xf32>
      %cst_25 = arith.constant dense<0.000000e+00> : vector<2x64xf32>
      %21 = tpu.matmul %arg14, %1, %cst_25 {dimension_numbers = #tpu.dot_dimension_numbers<[1], [0], [0], [1], [0, 0, 1, 1], [], []>} : vector<2x16xf32>, vector<16x64xf32>, vector<2x64xf32> -> vector<2x64xf32>
      %22 = arith.addf %20, %21 : vector<2x64xf32>
      %23 = vector.broadcast %2 : vector<1x64xf32> to vector<2x64xf32>
      %24 = arith.addf %22, %23 : vector<2x64xf32>
      %25 = vector.extract_strided_slice %24 {offsets = [0, 0], sizes = [2, 16], strides = [1, 1]} : vector<2x64xf32> to vector<2x16xf32>
      %26 = arith.negf %25 : vector<2x16xf32>
      %27 = math.exp %26 : vector<2x16xf32>
      %cst_26 = arith.constant 1.000000e+00 : f32
      %28 = vector.broadcast %cst_26 : f32 to vector<2x16xf32>
      %29 = arith.addf %28, %27 : vector<2x16xf32>
      %30 = arith.divf %28, %29 : vector<2x16xf32>
      %31 = vector.extract_strided_slice %24 {offsets = [0, 16], sizes = [2, 16], strides = [1, 1]} : vector<2x64xf32> to vector<2x16xf32>
      %32 = arith.negf %31 : vector<2x16xf32>
      %33 = math.exp %32 : vector<2x16xf32>
      %cst_27 = arith.constant 1.000000e+00 : f32
      %34 = vector.broadcast %cst_27 : f32 to vector<2x16xf32>
      %35 = arith.addf %34, %33 : vector<2x16xf32>
      %36 = arith.divf %34, %35 : vector<2x16xf32>
      %37 = vector.extract_strided_slice %24 {offsets = [0, 32], sizes = [2, 16], strides = [1, 1]} : vector<2x64xf32> to vector<2x16xf32>
      %38 = math.tanh %37 : vector<2x16xf32>
      %39 = vector.extract_strided_slice %24 {offsets = [0, 48], sizes = [2, 16], strides = [1, 1]} : vector<2x64xf32> to vector<2x16xf32>
      %40 = arith.negf %39 : vector<2x16xf32>
      %41 = math.exp %40 : vector<2x16xf32>
      %cst_28 = arith.constant 1.000000e+00 : f32
      %42 = vector.broadcast %cst_28 : f32 to vector<2x16xf32>
      %43 = arith.addf %42, %41 : vector<2x16xf32>
      %44 = arith.divf %42, %43 : vector<2x16xf32>
      %45 = arith.mulf %36, %arg15 : vector<2x16xf32>
      %46 = arith.mulf %30, %38 : vector<2x16xf32>
      %47 = arith.addf %45, %46 : vector<2x16xf32>
      %48 = math.tanh %47 : vector<2x16xf32>
      %49 = arith.mulf %44, %48 : vector<2x16xf32>
      %cst_29 = arith.constant dense<0.000000e+00> : vector<2x64xf32>
      %50 = tpu.matmul %19, %3, %cst_29 {dimension_numbers = #tpu.dot_dimension_numbers<[1], [0], [0], [1], [0, 0, 1, 1], [], []>} : vector<2x32xf32>, vector<32x64xf32>, vector<2x64xf32> -> vector<2x64xf32>
      %cst_30 = arith.constant dense<0.000000e+00> : vector<2x64xf32>
      %51 = tpu.matmul %arg16, %4, %cst_30 {dimension_numbers = #tpu.dot_dimension_numbers<[1], [0], [0], [1], [0, 0, 1, 1], [], []>} : vector<2x16xf32>, vector<16x64xf32>, vector<2x64xf32> -> vector<2x64xf32>
      %52 = arith.addf %50, %51 : vector<2x64xf32>
      %53 = vector.broadcast %5 : vector<1x64xf32> to vector<2x64xf32>
      %54 = arith.addf %52, %53 : vector<2x64xf32>
      %55 = vector.extract_strided_slice %54 {offsets = [0, 0], sizes = [2, 16], strides = [1, 1]} : vector<2x64xf32> to vector<2x16xf32>
      %56 = arith.negf %55 : vector<2x16xf32>
      %57 = math.exp %56 : vector<2x16xf32>
      %cst_31 = arith.constant 1.000000e+00 : f32
      %58 = vector.broadcast %cst_31 : f32 to vector<2x16xf32>
      %59 = arith.addf %58, %57 : vector<2x16xf32>
      %60 = arith.divf %58, %59 : vector<2x16xf32>
      %61 = vector.extract_strided_slice %54 {offsets = [0, 16], sizes = [2, 16], strides = [1, 1]} : vector<2x64xf32> to vector<2x16xf32>
      %62 = arith.negf %61 : vector<2x16xf32>
      %63 = math.exp %62 : vector<2x16xf32>
      %cst_32 = arith.constant 1.000000e+00 : f32
      %64 = vector.broadcast %cst_32 : f32 to vector<2x16xf32>
      %65 = arith.addf %64, %63 : vector<2x16xf32>
      %66 = arith.divf %64, %65 : vector<2x16xf32>
      %67 = vector.extract_strided_slice %54 {offsets = [0, 32], sizes = [2, 16], strides = [1, 1]} : vector<2x64xf32> to vector<2x16xf32>
      %68 = math.tanh %67 : vector<2x16xf32>
      %69 = vector.extract_strided_slice %54 {offsets = [0, 48], sizes = [2, 16], strides = [1, 1]} : vector<2x64xf32> to vector<2x16xf32>
      %70 = arith.negf %69 : vector<2x16xf32>
      %71 = math.exp %70 : vector<2x16xf32>
      %cst_33 = arith.constant 1.000000e+00 : f32
      %72 = vector.broadcast %cst_33 : f32 to vector<2x16xf32>
      %73 = arith.addf %72, %71 : vector<2x16xf32>
      %74 = arith.divf %72, %73 : vector<2x16xf32>
      %75 = arith.mulf %66, %arg17 : vector<2x16xf32>
      %76 = arith.mulf %60, %68 : vector<2x16xf32>
      %77 = arith.addf %75, %76 : vector<2x16xf32>
      %78 = math.tanh %77 : vector<2x16xf32>
      %79 = arith.mulf %74, %78 : vector<2x16xf32>
      %80 = arith.index_cast %arg13 : i32 to index
      %c0_34 = arith.constant 0 : index
      %c0_35 = arith.constant 0 : index
      %81 = vector.load %arg7[%80, %c0_34, %c0_35] : memref<8x2x16xf32, #tpu.memory_space<vmem>>, vector<1x2x16xf32>
      %82 = vector.shape_cast %81 : vector<1x2x16xf32> to vector<2x16xf32>
      %83 = vector.shape_cast %49 : vector<2x16xf32> to vector<1x2x16xf32>
      tpu.vector_store %arg7[%80, %c0_34, %c0_35], %83 {strides = array<i32>} : memref<8x2x16xf32, #tpu.memory_space<vmem>>, vector<1x2x16xf32>,
      %c7_i32_36 = arith.constant 7 : i32
      %84 = arith.subi %c7_i32_36, %arg13 : i32
      %85 = arith.index_cast %84 : i32 to index
      %c0_37 = arith.constant 0 : index
      %c0_38 = arith.constant 0 : index
      %86 = vector.load %arg8[%85, %c0_37, %c0_38] : memref<8x2x16xf32, #tpu.memory_space<vmem>>, vector<1x2x16xf32>
      %87 = vector.shape_cast %86 : vector<1x2x16xf32> to vector<2x16xf32>
      %88 = vector.shape_cast %79 : vector<2x16xf32> to vector<1x2x16xf32>
      tpu.vector_store %arg8[%85, %c0_37, %c0_38], %88 {strides = array<i32>} : memref<8x2x16xf32, #tpu.memory_space<vmem>>, vector<1x2x16xf32>,
      scf.yield %49, %47, %79, %77 : vector<2x16xf32>, vector<2x16xf32>, vector<2x16xf32>, vector<2x16xf32>
    }
    %c8_i32_11 = arith.constant 8 : i32
    %c0_12 = arith.constant 0 : index
    %c0_13 = arith.constant 0 : index
    %9 = vector.load %arg9[%c0_12, %c0_13] : memref<2x16xf32, #tpu.memory_space<vmem>>, vector<2x16xf32>
    tpu.vector_store %arg9[%c0_12, %c0_13], %8#0 {strides = array<i32>} : memref<2x16xf32, #tpu.memory_space<vmem>>, vector<2x16xf32>,
    %c0_14 = arith.constant 0 : index
    %c0_15 = arith.constant 0 : index
    %10 = vector.load %arg10[%c0_14, %c0_15] : memref<2x16xf32, #tpu.memory_space<vmem>>, vector<2x16xf32>
    tpu.vector_store %arg10[%c0_14, %c0_15], %8#1 {strides = array<i32>} : memref<2x16xf32, #tpu.memory_space<vmem>>, vector<2x16xf32>,
    %c0_16 = arith.constant 0 : index
    %c0_17 = arith.constant 0 : index
    %11 = vector.load %arg11[%c0_16, %c0_17] : memref<2x16xf32, #tpu.memory_space<vmem>>, vector<2x16xf32>
    tpu.vector_store %arg11[%c0_16, %c0_17], %8#2 {strides = array<i32>} : memref<2x16xf32, #tpu.memory_space<vmem>>, vector<2x16xf32>,
    %c0_18 = arith.constant 0 : index
    %c0_19 = arith.constant 0 : index
    %12 = vector.load %arg12[%c0_18, %c0_19] : memref<2x16xf32, #tpu.memory_space<vmem>>, vector<2x16xf32>
    tpu.vector_store %arg12[%c0_18, %c0_19], %8#3 {strides = array<i32>} : memref<2x16xf32, #tpu.memory_space<vmem>>, vector<2x16xf32>,
    return
  }
}

</mosaic_0001>

<llo_original>
// kernel: tpu_custom_call.1
$region0: #{tpu_custom_call.1}
  #allocation0 [shape = 'u32[]', space=smem, size = 0x4, offset = 0x4, fixed_abs, tag = 'smem constant byte address 0x4 - core index']
  #allocation1 [shape = 'u32[144,128]{1,0:T(1,128)}', space=vmem, size = 0x12000, scoped, tag = 'internal scratch']
  %s0 = inlined_call_operand.hbm [shape: f32[8,2,32], index: 0, kind: input, shape index: {}]
  %s1 = inlined_call_operand.hbm [shape: f32[32,64], index: 1, kind: input, shape index: {}]
  %s2 = inlined_call_operand.hbm [shape: f32[16,64], index: 2, kind: input, shape index: {}]
  %s3 = inlined_call_operand.vmem [shape: f32[1,64], index: 3, kind: input, shape index: {}]
  %s4 = inlined_call_operand.hbm [shape: f32[32,64], index: 4, kind: input, shape index: {}]
  %s5 = inlined_call_operand.hbm [shape: f32[16,64], index: 5, kind: input, shape index: {}]
  %s6 = inlined_call_operand.vmem [shape: f32[1,64], index: 6, kind: input, shape index: {}]
  %s7 = inlined_call_operand.hbm [shape: f32[8,2,16], index: 7, kind: output, shape index: {0}]
  %s8 = inlined_call_operand.hbm [shape: f32[8,2,16], index: 8, kind: output, shape index: {1}]
  %s9 = inlined_call_operand.hbm [shape: f32[2,16], index: 9, kind: output, shape index: {2}]
  %s10 = inlined_call_operand.hbm [shape: f32[2,16], index: 10, kind: output, shape index: {3}]
  %s11 = inlined_call_operand.hbm [shape: f32[2,16], index: 11, kind: output, shape index: {4}]
  %s12 = inlined_call_operand.hbm [shape: f32[2,16], index: 12, kind: output, shape index: {5}]
  %13 = xla_tuple %s7, %s8, %s9, %s10, %s11, %s12
  %s14 = sld [smem:[#allocation0]]
  $region105: #{tpu_custom_call.1} parent=0
    _
  %s16 = ssub.s32 1, %s14
  %s17 = scalar_select 0, %s16, %s14
  $region1: #{tpu_custom_call.1} parent=0
    #allocation2 [shape = 'u8[8192]{0}', space=vmem, size = 0x2000, scoped, tag = 'input window, operand 0, single buffered']
    #allocation3 [shape = 's32[1]{0}', space=sflag, size = 0x4, scoped, tag = 'scoped memory for tpu_custom_call.1']
    #allocation4 [shape = 's32[1]{0}', space=sflag, size = 0x4, scoped, tag = 'scoped memory for tpu_custom_call.1']
    #allocation5 [shape = 'u8[16384]{0}', space=vmem, size = 0x4000, scoped, tag = 'input window, operand 1, single buffered']
    #allocation6 [shape = 's32[1]{0}', space=sflag, size = 0x4, scoped, tag = 'scoped memory for tpu_custom_call.1']
    #allocation7 [shape = 'u8[8192]{0}', space=vmem, size = 0x2000, scoped, tag = 'input window, operand 2, single buffered']
    #allocation8 [shape = 'u8[16384]{0}', space=vmem, size = 0x4000, scoped, tag = 'input window, operand 4, single buffered']
    #allocation9 [shape = 's32[1]{0}', space=sflag, size = 0x4, scoped, tag = 'scoped memory for tpu_custom_call.1']
    #allocation10 [shape = 'u8[8192]{0}', space=vmem, size = 0x2000, scoped, tag = 'input window, operand 5, single buffered']
    #allocation11 [shape = 'u8[8192]{0}', space=vmem, size = 0x2000, scoped, tag = 'output window, operand 0, single buffered']
    #allocation12 [shape = 'u8[8192]{0}', space=vmem, size = 0x2000, scoped, tag = 'output window, operand 1, single buffered']
    #allocation13 [shape = 's32[1]{0}', space=sflag, size = 0x4, scoped, tag = 'scoped memory for tpu_custom_call.1']
    #allocation14 [shape = 'u8[1024]{0}', space=vmem, size = 0x400, scoped, tag = 'output window, operand 2, single buffered']
    #allocation15 [shape = 'u8[1024]{0}', space=vmem, size = 0x400, scoped, tag = 'output window, operand 3, single buffered']
    #allocation16 [shape = 's32[1]{0}', space=sflag, size = 0x4, scoped, tag = 'scoped memory for tpu_custom_call.1']
    #allocation17 [shape = 'u8[1024]{0}', space=vmem, size = 0x400, scoped, tag = 'output window, operand 4, single buffered']
    #allocation18 [shape = 'u8[1024]{0}', space=vmem, size = 0x400, scoped, tag = 'output window, operand 5, single buffered']
    #allocation19 [shape = 's32[1]{0}', space=sflag, size = 0x4, scoped, tag = 'scoped memory for tpu_custom_call.1']
    %18 = vsyncpa [#allocation3], 0
    %19 = vsyncpa [#allocation6], 0
    %20 = vsyncpa [#allocation9], 0
    %21 = vsyncpa [#allocation4], 0
    %22 = vsyncpa [#allocation13], 0
    %23 = vsyncpa [#allocation16], 0
    %24 = vsyncpa [#allocation19], 0
    // Predicated region
    $region2: #{tpu_custom_call.1} parent=1 // pred_check
      _
    $region3: #{tpu_custom_call.1} parent=1 // pred_check_branch
      %26 = sbr.rel (0) target = $region5
    $region4: #{tpu_custom_call.1} parent=1 // pred_region
      %s28 = ssub.s32 256, 256
      %29 = vsyncadd [#allocation3], %s28
      %s30 = sshll.u32 [#allocation2], 4
      %s31 = int_to_ptr.vmem [resolvable:$true] %s30
      %36 = dma.hbm_to_vmem [thread:$0]  %s0, 256, %s31, [#allocation3], 32, 32, 2
    $region5: #{tpu_custom_call.1} parent=1 // pred_fallthru
      _
    // Predicated region
    $region6: #{tpu_custom_call.1} parent=1 // pred_check
      _
    $region7: #{tpu_custom_call.1} parent=1 // pred_check_branch
      %38 = sbr.rel (0) target = $region9
    $region8: #{tpu_custom_call.1} parent=1 // pred_region
      %s40 = ssub.s32 512, 512
      %41 = vsyncadd [#allocation6], %s40
      %s42 = sshll.u32 [#allocation5], 4
      %s43 = int_to_ptr.vmem [resolvable:$true] %s42
      %48 = dma.hbm_to_vmem [thread:$0]  %s1, 512, %s43, [#allocation6], 128, 128, 8
    $region9: #{tpu_custom_call.1} parent=1 // pred_fallthru
      _
    // Predicated region
    $region10: #{tpu_custom_call.1} parent=1 // pred_check
      _
    $region11: #{tpu_custom_call.1} parent=1 // pred_check_branch
      %50 = sbr.rel (0) target = $region13
    $region12: #{tpu_custom_call.1} parent=1 // pred_region
      %s52 = ssub.s32 256, 256
      %53 = vsyncadd [#allocation6], %s52
      %s54 = sshll.u32 [#allocation7], 4
      %s55 = int_to_ptr.vmem [resolvable:$true] %s54
      %60 = dma.hbm_to_vmem [thread:$0]  %s2, 256, %s55, [#allocation6], 128, 128, 8
    $region13: #{tpu_custom_call.1} parent=1 // pred_fallthru
      _
    // Predicated region
    $region14: #{tpu_custom_call.1} parent=1 // pred_check
      _
    $region15: #{tpu_custom_call.1} parent=1 // pred_check_branch
      %62 = sbr.rel (0) target = $region17
    $region16: #{tpu_custom_call.1} parent=1 // pred_region
      _
    $region17: #{tpu_custom_call.1} parent=1 // pred_fallthru
      _
    // Predicated region
    $region18: #{tpu_custom_call.1} parent=1 // pred_check
      _
    $region19: #{tpu_custom_call.1} parent=1 // pred_check_branch
      %64 = sbr.rel (0) target = $region21
    $region20: #{tpu_custom_call.1} parent=1 // pred_region
      %s66 = ssub.s32 512, 512
      %67 = vsyncadd [#allocation9], %s66
      %s68 = sshll.u32 [#allocation8], 4
      %s69 = int_to_ptr.vmem [resolvable:$true] %s68
      %74 = dma.hbm_to_vmem [thread:$0]  %s4, 512, %s69, [#allocation9], 128, 128, 8
    $region21: #{tpu_custom_call.1} parent=1 // pred_fallthru
      _
    // Predicated region
    $region22: #{tpu_custom_call.1} parent=1 // pred_check
      _
    $region23: #{tpu_custom_call.1} parent=1 // pred_check_branch
      %76 = sbr.rel (0) target = $region25
    $region24: #{tpu_custom_call.1} parent=1 // pred_region
      %s78 = ssub.s32 256, 256
      %79 = vsyncadd [#allocation9], %s78
      %s80 = sshll.u32 [#allocation10], 4
      %s81 = int_to_ptr.vmem [resolvable:$true] %s80
      %86 = dma.hbm_to_vmem [thread:$0]  %s5, 256, %s81, [#allocation9], 128, 128, 8
    $region25: #{tpu_custom_call.1} parent=1 // pred_fallthru
      _
    // Predicated region
    $region26: #{tpu_custom_call.1} parent=1 // pred_check
      _
    $region27: #{tpu_custom_call.1} parent=1 // pred_check_branch
      %88 = sbr.rel (0) target = $region29
    $region28: #{tpu_custom_call.1} parent=1 // pred_region
      _
    $region29: #{tpu_custom_call.1} parent=1 // pred_fallthru
      _
    // Predicated region
    $region30: #{tpu_custom_call.1} parent=1 // pred_check
      _
    $region31: #{tpu_custom_call.1} parent=1 // pred_check_branch
      %90 = sbr.rel (0) target = $region33
    $region32: #{tpu_custom_call.1} parent=1 // pred_region
      %91 = dma.done [#allocation3], 256
    $region33: #{tpu_custom_call.1} parent=1 // pred_fallthru
      _
    // Predicated region
    $region34: #{tpu_custom_call.1} parent=1 // pred_check
      _
    $region35: #{tpu_custom_call.1} parent=1 // pred_check_branch
      %93 = sbr.rel (0) target = $region37
    $region36: #{tpu_custom_call.1} parent=1 // pred_region
      %94 = dma.done [#allocation6], 512
    $region37: #{tpu_custom_call.1} parent=1 // pred_fallthru
      _
    // Predicated region
    $region38: #{tpu_custom_call.1} parent=1 // pred_check
      _
    $region39: #{tpu_custom_call.1} parent=1 // pred_check_branch
      %96 = sbr.rel (0) target = $region41
    $region40: #{tpu_custom_call.1} parent=1 // pred_region
      %97 = dma.done [#allocation6], 256
    $region41: #{tpu_custom_call.1} parent=1 // pred_fallthru
      _
    // Predicated region
    $region42: #{tpu_custom_call.1} parent=1 // pred_check
      _
    $region43: #{tpu_custom_call.1} parent=1 // pred_check_branch
      %99 = sbr.rel (0) target = $region45
    $region44: #{tpu_custom_call.1} parent=1 // pred_region
      %100 = dma.done [#allocation9], 512
    $region45: #{tpu_custom_call.1} parent=1 // pred_fallthru
      _
    // Predicated region
    $region46: #{tpu_custom_call.1} parent=1 // pred_check
      _
    $region47: #{tpu_custom_call.1} parent=1 // pred_check_branch
      %102 = sbr.rel (0) target = $region49
    $region48: #{tpu_custom_call.1} parent=1 // pred_region
      %103 = dma.done [#allocation9], 256
    $region49: #{tpu_custom_call.1} parent=1 // pred_fallthru
      _
    %v104 = vld [vmem:[#allocation5] sm:$0xff]
    %v105 = vld [vmem:[#allocation5 + $0x8] sm:$0xff]
    %v106 = vld [vmem:[#allocation5 + $0x10] sm:$0xff]
    %v107 = vld [vmem:[#allocation5 + $0x18] sm:$0xff]
    %v108 = vld [vmem:[#allocation7] sm:$0xff]
    %v109 = vld [vmem:[#allocation7 + $0x8] sm:$0xff]
    %v110 = vld [vmem:[%s3] sm:$0x1]
    %v111 = vld [vmem:[#allocation8] sm:$0xff]
    %v112 = vld [vmem:[#allocation8 + $0x8] sm:$0xff]
    %v113 = vld [vmem:[#allocation8 + $0x10] sm:$0xff]
    %v114 = vld [vmem:[#allocation8 + $0x18] sm:$0xff]
    %v115 = vld [vmem:[#allocation10] sm:$0xff]
    %v116 = vld [vmem:[#allocation10 + $0x8] sm:$0xff]
    %v117 = vld [vmem:[%s6] sm:$0x1]
    loop: start=0, step=1, limit=8
    $region50: #{tpu_custom_call.1} parent=1 // loop_pre_header
      _
    $region51: #{tpu_custom_call.1} parent=1 // loop_header
      %s119 = sphi 0, %s123
      %p120 = scmp.ge.s32.totalorder %s119, 8
      %v124 = vphi 0.0, %v315
      %v125 = vphi 0.0, %v309
      %v126 = vphi 0.0, %v494
      %v127 = vphi 0.0, %v488
    $region52: #{tpu_custom_call.1} parent=1 // loop_header_branch
      %122 = sbr.rel (%p120) target = $region56
    $region53: #{tpu_custom_call.1} parent=1 // loop_body
      %s128 = smul.u32 %s119, 2
      %s129 = scalar_lea.vmem [#allocation2], %s128
      %v130 = vld [vmem:[%s129] sm:$0x3]
      %s131 = ssub.s32 7, %s119
      %s132 = smul.u32 %s131, 2
      %s133 = scalar_lea.vmem [#allocation2], %s132
      %v134 = vld [vmem:[%s133] sm:$0x3]
      %136 = vrot.lane.b32.xlu0 %v124, 80
      %v137 = vpop.permute.xlu0 %136
      %vm138 = vcmask 130048
      %v139 = vsel %vm138, %v137, 0
      %141 = vmatprep.subr.mxu0 0.0
      %142 = vmatpush1.msra.mxu0 0.0
      %143 = vmatprep.subr.mxu0 0.0
      %144 = vmatpush1.msra.mxu0 0.0
      %145 = vmatprep.subr.mxu0 0.0
      %146 = vmatpush1.msra.mxu0 0.0
      %147 = vmatprep.subr.mxu0 0.0
      %148 = vmatpush1.msra.mxu0 0.0
      %149 = vmatprep.subr.mxu0 0.0
      %150 = vmatpush1.msra.mxu0 0.0
      %151 = vmatprep.subr.mxu0 0.0
      %152 = vmatpush1.msra.mxu0 0.0
      %153 = vmatprep.subr.mxu0 0.0
      %154 = vmatpush1.msra.mxu0 0.0
      %155 = vmatprep.subr.mxu0 0.0
      %156 = vmatpush1.msra.mxu0 0.0
      %157 = vmatprep.subr.mxu0 0.0
      %158 = vmatpush1.msra.mxu0 0.0
      %159 = vmatprep.subr.mxu0 0.0
      %160 = vmatpush1.msra.mxu0 0.0
      %161 = vmatprep.subr.mxu0 0.0
      %162 = vmatpush1.msra.mxu0 0.0
      %163 = vmatprep.subr.mxu0 0.0
      %164 = vmatpush1.msra.mxu0 0.0
      %165 = vmatprep.subr.mxu0 0.0
      %166 = vmatpush1.msra.mxu0 0.0
      %167 = vmatprep.subr.mxu0 0.0
      %168 = vmatpush1.msra.mxu0 0.0
      %169 = vmatprep.subr.mxu0 0.0
      %170 = vmatpush1.msra.mxu0 %v109
      %171 = vmatprep.subr.mxu0 0.0
      %172 = vmatpush1.msra.mxu0 %v108
      %173 = vmatprep.subr.mxu0 0.0
      %174 = vmatpush2.msra.mxu0 0.0
      %175 = vmatprep.subr.mxu0 0.0
      %176 = vmatpush2.msra.mxu0 0.0
      %177 = vmatprep.subr.mxu0 0.0
      %178 = vmatpush2.msra.mxu0 0.0
      %179 = vmatprep.subr.mxu0 0.0
      %180 = vmatpush2.msra.mxu0 0.0
      %181 = vmatprep.subr.mxu0 0.0
      %182 = vmatpush2.msra.mxu0 0.0
      %183 = vmatprep.subr.mxu0 0.0
      %184 = vmatpush2.msra.mxu0 0.0
      %185 = vmatprep.subr.mxu0 0.0
      %186 = vmatpush2.msra.mxu0 0.0
      %187 = vmatprep.subr.mxu0 0.0
      %188 = vmatpush2.msra.mxu0 0.0
      %189 = vmatprep.subr.mxu0 0.0
      %190 = vmatpush2.msra.mxu0 0.0
      %191 = vmatprep.subr.mxu0 0.0
      %192 = vmatpush2.msra.mxu0 0.0
      %193 = vmatprep.subr.mxu0 0.0
      %194 = vmatpush2.msra.mxu0 0.0
      %195 = vmatprep.subr.mxu0 0.0
      %196 = vmatpush2.msra.mxu0 0.0
      %197 = vmatprep.subr.mxu0 0.0
      %198 = vmatpush2.msra.mxu0 0.0
      %199 = vmatprep.subr.mxu0 0.0
      %200 = vmatpush2.msra.mxu0 0.0
      %201 = vmatprep.subr.mxu0 0.0
      %202 = vmatpush2.msra.mxu0 0.0
      %203 = vmatprep.subr.mxu0 0.0
      %204 = vmatpush2.msra.mxu0 0.0
      %205 = vmatprep.mubr.f32.mxu0 0.0
      %206 = vmatmul.mubr.f32.gmra.mxu0 %v139
      %v207 = vpop.f32.mrf.mxu0
      %v208 = vadd.f32 0.0, %v207
      %v209 = vpop.f32.mrf.mxu0
      %210 = vdwg.mxu0
      %vm211 = vcmask 261120
      %v213 = vsel %vm211, %v130, 0
      %215 = vmatprep.subr.mxu0 0.0
      %216 = vmatpush1.msra.mxu0 0.0
      %217 = vmatprep.subr.mxu0 0.0
      %218 = vmatpush1.msra.mxu0 0.0
      %219 = vmatprep.subr.mxu0 0.0
      %220 = vmatpush1.msra.mxu0 0.0
      %221 = vmatprep.subr.mxu0 0.0
      %222 = vmatpush1.msra.mxu0 0.0
      %223 = vmatprep.subr.mxu0 0.0
      %224 = vmatpush1.msra.mxu0 0.0
      %225 = vmatprep.subr.mxu0 0.0
      %226 = vmatpush1.msra.mxu0 0.0
      %227 = vmatprep.subr.mxu0 0.0
      %228 = vmatpush1.msra.mxu0 0.0
      %229 = vmatprep.subr.mxu0 0.0
      %230 = vmatpush1.msra.mxu0 0.0
      %231 = vmatprep.subr.mxu0 0.0
      %232 = vmatpush1.msra.mxu0 0.0
      %233 = vmatprep.subr.mxu0 0.0
      %234 = vmatpush1.msra.mxu0 0.0
      %235 = vmatprep.subr.mxu0 0.0
      %236 = vmatpush1.msra.mxu0 0.0
      %237 = vmatprep.subr.mxu0 0.0
      %238 = vmatpush1.msra.mxu0 0.0
      %239 = vmatprep.subr.mxu0 0.0
      %240 = vmatpush1.msra.mxu0 %v107
      %241 = vmatprep.subr.mxu0 0.0
      %242 = vmatpush1.msra.mxu0 %v106
      %243 = vmatprep.subr.mxu0 0.0
      %244 = vmatpush1.msra.mxu0 %v105
      %245 = vmatprep.subr.mxu0 0.0
      %246 = vmatpush1.msra.mxu0 %v104
      %247 = vmatprep.subr.mxu0 0.0
      %248 = vmatpush2.msra.mxu0 0.0
      %249 = vmatprep.subr.mxu0 0.0
      %250 = vmatpush2.msra.mxu0 0.0
      %251 = vmatprep.subr.mxu0 0.0
      %252 = vmatpush2.msra.mxu0 0.0
      %253 = vmatprep.subr.mxu0 0.0
      %254 = vmatpush2.msra.mxu0 0.0
      %255 = vmatprep.subr.mxu0 0.0
      %256 = vmatpush2.msra.mxu0 0.0
      %257 = vmatprep.subr.mxu0 0.0
      %258 = vmatpush2.msra.mxu0 0.0
      %259 = vmatprep.subr.mxu0 0.0
      %260 = vmatpush2.msra.mxu0 0.0
      %261 = vmatprep.subr.mxu0 0.0
      %262 = vmatpush2.msra.mxu0 0.0
      %263 = vmatprep.subr.mxu0 0.0
      %264 = vmatpush2.msra.mxu0 0.0
      %265 = vmatprep.subr.mxu0 0.0
      %266 = vmatpush2.msra.mxu0 0.0
      %267 = vmatprep.subr.mxu0 0.0
      %268 = vmatpush2.msra.mxu0 0.0
      %269 = vmatprep.subr.mxu0 0.0
      %270 = vmatpush2.msra.mxu0 0.0
      %271 = vmatprep.subr.mxu0 0.0
      %272 = vmatpush2.msra.mxu0 0.0
      %273 = vmatprep.subr.mxu0 0.0
      %274 = vmatpush2.msra.mxu0 0.0
      %275 = vmatprep.subr.mxu0 0.0
      %276 = vmatpush2.msra.mxu0 0.0
      %277 = vmatprep.subr.mxu0 0.0
      %278 = vmatpush2.msra.mxu0 0.0
      %279 = vmatprep.mubr.f32.mxu0 0.0
      %280 = vmatmul.mubr.f32.gmra.mxu0 %v213
      %v281 = vpop.f32.mrf.mxu0
      %v282 = vadd.f32 %v208, %v281
      %v283 = vpop.f32.mrf.mxu0
      %284 = vdwg.mxu0
      %v286 = vlaneseq
      %v287 = vshrl.u32 %v286, 7
      %v288 = vsub.s32 0, %v287
      %v289 = vrot.slane %v110, %v288
      %v291 = vadd.f32 %v282, %v289
      %v292 = vxor.u32 %v291, 2147483648
      %v293 = vmul.f32 %v292, 1.442695
      %v294 = vpow.pop %v293
      %v295 = vadd.f32 %v294, 1.0
      %v296 = vrcp.pop %v295
      %v297 = vmul.f32 1.0, %v296
      %v298 = vtanh.pop %v291
      %v299 = vmul.f32 %v297, %v125
      %301 = vrot.lane.b32.xlu0 %v298, 96
      %v302 = vpop.permute.xlu0 %301
      %v304 = vmul.f32 %v297, %v302
      %306 = vrot.lane.b32.xlu0 %v304, 16
      %v307 = vpop.permute.xlu0 %306
      %v309 = vadd.f32 %v299, %v307
      %v310 = vtanh.pop %v309
      %312 = vrot.lane.b32.xlu0 %v310, 32
      %v313 = vpop.permute.xlu0 %312
      %v315 = vmul.f32 %v297, %v313
      %317 = vrot.lane.b32.xlu0 %v126, 80
      %v318 = vpop.permute.xlu0 %317
      %v319 = vsel %vm138, %v318, 0
      %321 = vmatprep.subr.mxu0 0.0
      %322 = vmatpush1.msra.mxu0 0.0
      %323 = vmatprep.subr.mxu0 0.0
      %324 = vmatpush1.msra.mxu0 0.0
      %325 = vmatprep.subr.mxu0 0.0
      %326 = vmatpush1.msra.mxu0 0.0
      %327 = vmatprep.subr.mxu0 0.0
      %328 = vmatpush1.msra.mxu0 0.0
      %329 = vmatprep.subr.mxu0 0.0
      %330 = vmatpush1.msra.mxu0 0.0
      %331 = vmatprep.subr.mxu0 0.0
      %332 = vmatpush1.msra.mxu0 0.0
      %333 = vmatprep.subr.mxu0 0.0
      %334 = vmatpush1.msra.mxu0 0.0
      %335 = vmatprep.subr.mxu0 0.0
      %336 = vmatpush1.msra.mxu0 0.0
      %337 = vmatprep.subr.mxu0 0.0
      %338 = vmatpush1.msra.mxu0 0.0
      %339 = vmatprep.subr.mxu0 0.0
      %340 = vmatpush1.msra.mxu0 0.0
      %341 = vmatprep.subr.mxu0 0.0
      %342 = vmatpush1.msra.mxu0 0.0
      %343 = vmatprep.subr.mxu0 0.0
      %344 = vmatpush1.msra.mxu0 0.0
      %345 = vmatprep.subr.mxu0 0.0
      %346 = vmatpush1.msra.mxu0 0.0
      %347 = vmatprep.subr.mxu0 0.0
      %348 = vmatpush1.msra.mxu0 0.0
      %349 = vmatprep.subr.mxu0 0.0
      %350 = vmatpush1.msra.mxu0 %v116
      %351 = vmatprep.subr.mxu0 0.0
      %352 = vmatpush1.msra.mxu0 %v115
      %353 = vmatprep.subr.mxu0 0.0
      %354 = vmatpush2.msra.mxu0 0.0
      %355 = vmatprep.subr.mxu0 0.0
      %356 = vmatpush2.msra.mxu0 0.0
      %357 = vmatprep.subr.mxu0 0.0
      %358 = vmatpush2.msra.mxu0 0.0
      %359 = vmatprep.subr.mxu0 0.0
      %360 = vmatpush2.msra.mxu0 0.0
      %361 = vmatprep.subr.mxu0 0.0
      %362 = vmatpush2.msra.mxu0 0.0
      %363 = vmatprep.subr.mxu0 0.0
      %364 = vmatpush2.msra.mxu0 0.0
      %365 = vmatprep.subr.mxu0 0.0
      %366 = vmatpush2.msra.mxu0 0.0
      %367 = vmatprep.subr.mxu0 0.0
      %368 = vmatpush2.msra.mxu0 0.0
      %369 = vmatprep.subr.mxu0 0.0
      %370 = vmatpush2.msra.mxu0 0.0
      %371 = vmatprep.subr.mxu0 0.0
      %372 = vmatpush2.msra.mxu0 0.0
      %373 = vmatprep.subr.mxu0 0.0
      %374 = vmatpush2.msra.mxu0 0.0
      %375 = vmatprep.subr.mxu0 0.0
      %376 = vmatpush2.msra.mxu0 0.0
      %377 = vmatprep.subr.mxu0 0.0
      %378 = vmatpush2.msra.mxu0 0.0
      %379 = vmatprep.subr.mxu0 0.0
      %380 = vmatpush2.msra.mxu0 0.0
      %381 = vmatprep.subr.mxu0 0.0
      %382 = vmatpush2.msra.mxu0 0.0
      %383 = vmatprep.subr.mxu0 0.0
      %384 = vmatpush2.msra.mxu0 0.0
      %385 = vmatprep.mubr.f32.mxu0 0.0
      %386 = vmatmul.mubr.f32.gmra.mxu0 %v319
      %v387 = vpop.f32.mrf.mxu0
      %v388 = vadd.f32 0.0, %v387
      %v389 = vpop.f32.mrf.mxu0
      %390 = vdwg.mxu0
      %v392 = vsel %vm211, %v134, 0
      %394 = vmatprep.subr.mxu0 0.0
      %395 = vmatpush1.msra.mxu0 0.0
      %396 = vmatprep.subr.mxu0 0.0
      %397 = vmatpush1.msra.mxu0 0.0
      %398 = vmatprep.subr.mxu0 0.0
      %399 = vmatpush1.msra.mxu0 0.0
      %400 = vmatprep.subr.mxu0 0.0
      %401 = vmatpush1.msra.mxu0 0.0
      %402 = vmatprep.subr.mxu0 0.0
      %403 = vmatpush1.msra.mxu0 0.0
      %404 = vmatprep.subr.mxu0 0.0
      %405 = vmatpush1.msra.mxu0 0.0
      %406 = vmatprep.subr.mxu0 0.0
      %407 = vmatpush1.msra.mxu0 0.0
      %408 = vmatprep.subr.mxu0 0.0
      %409 = vmatpush1.msra.mxu0 0.0
      %410 = vmatprep.subr.mxu0 0.0
      %411 = vmatpush1.msra.mxu0 0.0
      %412 = vmatprep.subr.mxu0 0.0
      %413 = vmatpush1.msra.mxu0 0.0
      %414 = vmatprep.subr.mxu0 0.0
      %415 = vmatpush1.msra.mxu0 0.0
      %416 = vmatprep.subr.mxu0 0.0
      %417 = vmatpush1.msra.mxu0 0.0
      %418 = vmatprep.subr.mxu0 0.0
      %419 = vmatpush1.msra.mxu0 %v114
      %420 = vmatprep.subr.mxu0 0.0
      %421 = vmatpush1.msra.mxu0 %v113
      %422 = vmatprep.subr.mxu0 0.0
      %423 = vmatpush1.msra.mxu0 %v112
      %424 = vmatprep.subr.mxu0 0.0
      %425 = vmatpush1.msra.mxu0 %v111
      %426 = vmatprep.subr.mxu0 0.0
      %427 = vmatpush2.msra.mxu0 0.0
      %428 = vmatprep.subr.mxu0 0.0
      %429 = vmatpush2.msra.mxu0 0.0
      %430 = vmatprep.subr.mxu0 0.0
      %431 = vmatpush2.msra.mxu0 0.0
      %432 = vmatprep.subr.mxu0 0.0
      %433 = vmatpush2.msra.mxu0 0.0
      %434 = vmatprep.subr.mxu0 0.0
      %435 = vmatpush2.msra.mxu0 0.0
      %436 = vmatprep.subr.mxu0 0.0
      %437 = vmatpush2.msra.mxu0 0.0
      %438 = vmatprep.subr.mxu0 0.0
      %439 = vmatpush2.msra.mxu0 0.0
      %440 = vmatprep.subr.mxu0 0.0
      %441 = vmatpush2.msra.mxu0 0.0
      %442 = vmatprep.subr.mxu0 0.0
      %443 = vmatpush2.msra.mxu0 0.0
      %444 = vmatprep.subr.mxu0 0.0
      %445 = vmatpush2.msra.mxu0 0.0
      %446 = vmatprep.subr.mxu0 0.0
      %447 = vmatpush2.msra.mxu0 0.0
      %448 = vmatprep.subr.mxu0 0.0
      %449 = vmatpush2.msra.mxu0 0.0
      %450 = vmatprep.subr.mxu0 0.0
      %451 = vmatpush2.msra.mxu0 0.0
      %452 = vmatprep.subr.mxu0 0.0
      %453 = vmatpush2.msra.mxu0 0.0
      %454 = vmatprep.subr.mxu0 0.0
      %455 = vmatpush2.msra.mxu0 0.0
      %456 = vmatprep.subr.mxu0 0.0
      %457 = vmatpush2.msra.mxu0 0.0
      %458 = vmatprep.mubr.f32.mxu0 0.0
      %459 = vmatmul.mubr.f32.gmra.mxu0 %v392
      %v460 = vpop.f32.mrf.mxu0
      %v461 = vadd.f32 %v388, %v460
      %v462 = vpop.f32.mrf.mxu0
      %463 = vdwg.mxu0
      %v465 = vlaneseq
      %v466 = vshrl.u32 %v465, 7
      %v467 = vsub.s32 0, %v466
      %v468 = vrot.slane %v117, %v467
      %v470 = vadd.f32 %v461, %v468
      %v471 = vxor.u32 %v470, 2147483648
      %v472 = vmul.f32 %v471, 1.442695
      %v473 = vpow.pop %v472
      %v474 = vadd.f32 %v473, 1.0
      %v475 = vrcp.pop %v474
      %v476 = vmul.f32 1.0, %v475
      %v477 = vtanh.pop %v470
      %v478 = vmul.f32 %v476, %v127
      %480 = vrot.lane.b32.xlu0 %v477, 96
      %v481 = vpop.permute.xlu0 %480
      %v483 = vmul.f32 %v476, %v481
      %485 = vrot.lane.b32.xlu0 %v483, 16
      %v486 = vpop.permute.xlu0 %485
      %v488 = vadd.f32 %v478, %v486
      %v489 = vtanh.pop %v488
      %491 = vrot.lane.b32.xlu0 %v489, 32
      %v492 = vpop.permute.xlu0 %491
      %v494 = vmul.f32 %v476, %v492
      %496 = vrot.lane.b32.xlu0 %v315, 80
      %v497 = vpop.permute.xlu0 %496
      %s499 = scalar_lea.vmem [#allocation11], %s128
      %vm500 = vcmask 123904
      %501 = vst.msk [vmem:[%s499] sm:$0x3] %vm500, %v497
      %503 = vrot.lane.b32.xlu0 %v494, 80
      %v504 = vpop.permute.xlu0 %503
      %s506 = scalar_lea.vmem [#allocation12], %s132
      %507 = vst.msk [vmem:[%s506] sm:$0x3] %vm500, %v504
    $region54: #{tpu_custom_call.1} parent=1 // loop_footer
      %s123 = sadd.s32 1, %s119
    $region55: #{tpu_custom_call.1} parent=1 // loop_footer_branch
      %118 = sbr.rel target = $region51
    $region56: #{tpu_custom_call.1} parent=1 // loop_exit
      _
    %509 = vrot.lane.b32.xlu0 %v124, 80
    %v510 = vpop.permute.xlu0 %509
    %vm512 = vcmask 123904
    %513 = vst.msk [vmem:[#allocation14] sm:$0x3] %vm512, %v510
    %515 = vrot.lane.b32.xlu0 %v125, 112
    %v516 = vpop.permute.xlu0 %515
    %518 = vst.msk [vmem:[#allocation15] sm:$0x3] %vm512, %v516
    %520 = vrot.lane.b32.xlu0 %v126, 80
    %v521 = vpop.permute.xlu0 %520
    %523 = vst.msk [vmem:[#allocation17] sm:$0x3] %vm512, %v521
    %525 = vrot.lane.b32.xlu0 %v127, 112
    %v526 = vpop.permute.xlu0 %525
    %528 = vst.msk [vmem:[#allocation18] sm:$0x3] %vm512, %v526
    // Predicated region
    $region57: #{tpu_custom_call.1} parent=1 // pred_check
      _
    $region58: #{tpu_custom_call.1} parent=1 // pred_check_branch
      %530 = sbr.rel (0) target = $region60
    $region59: #{tpu_custom_call.1} parent=1 // pred_region
      %s532 = ssub.s32 256, 256
      %533 = vsyncadd [#allocation4], %s532
      %s534 = sshll.u32 [#allocation11], 4
      %s535 = int_to_ptr.vmem [resolvable:$true] %s534
      %540 = dma.vmem_to_hbm [thread:$0]  %s535, 256, %s7, [#allocation4], 32, 32, 2
    $region60: #{tpu_custom_call.1} parent=1 // pred_fallthru
      _
    // Predicated region
    $region61: #{tpu_custom_call.1} parent=1 // pred_check
      _
    $region62: #{tpu_custom_call.1} parent=1 // pred_check_branch
      %542 = sbr.rel (0) target = $region64
    $region63: #{tpu_custom_call.1} parent=1 // pred_region
      %s544 = ssub.s32 256, 256
      %545 = vsyncadd [#allocation13], %s544
      %s546 = sshll.u32 [#allocation12], 4
      %s547 = int_to_ptr.vmem [resolvable:$true] %s546
      %552 = dma.vmem_to_hbm [thread:$0]  %s547, 256, %s8, [#allocation13], 32, 32, 2
    $region64: #{tpu_custom_call.1} parent=1 // pred_fallthru
      _
    // Predicated region
    $region65: #{tpu_custom_call.1} parent=1 // pred_check
      _
    $region66: #{tpu_custom_call.1} parent=1 // pred_check_branch
      %554 = sbr.rel (0) target = $region68
    $region67: #{tpu_custom_call.1} parent=1 // pred_region
      %s556 = ssub.s32 32, 32
      %557 = vsyncadd [#allocation13], %s556
      %s559 = sshll.u32 [#allocation14], 4
      %s560 = int_to_ptr.vmem [resolvable:$true] %s559
      %562 = dma.vmem_to_hbm [thread:$0]  %s560, 32, %s9, [#allocation13]
    $region68: #{tpu_custom_call.1} parent=1 // pred_fallthru
      _
    // Predicated region
    $region69: #{tpu_custom_call.1} parent=1 // pred_check
      _
    $region70: #{tpu_custom_call.1} parent=1 // pred_check_branch
      %564 = sbr.rel (0) target = $region72
    $region71: #{tpu_custom_call.1} parent=1 // pred_region
      %s566 = ssub.s32 32, 32
      %567 = vsyncadd [#allocation16], %s566
      %s569 = sshll.u32 [#allocation15], 4
      %s570 = int_to_ptr.vmem [resolvable:$true] %s569
      %572 = dma.vmem_to_hbm [thread:$0]  %s570, 32, %s10, [#allocation16]
    $region72: #{tpu_custom_call.1} parent=1 // pred_fallthru
      _
    // Predicated region
    $region73: #{tpu_custom_call.1} parent=1 // pred_check
      _
    $region74: #{tpu_custom_call.1} parent=1 // pred_check_branch
      %574 = sbr.rel (0) target = $region76
    $region75: #{tpu_custom_call.1} parent=1 // pred_region
      %s576 = ssub.s32 32, 32
      %577 = vsyncadd [#allocation16], %s576
      %s579 = sshll.u32 [#allocation17], 4
      %s580 = int_to_ptr.vmem [resolvable:$true] %s579
      %582 = dma.vmem_to_hbm [thread:$0]  %s580, 32, %s11, [#allocation16]
    $region76: #{tpu_custom_call.1} parent=1 // pred_fallthru
      _
    // Predicated region
    $region77: #{tpu_custom_call.1} parent=1 // pred_check
      _
    $region78: #{tpu_custom_call.1} parent=1 // pred_check_branch
      %584 = sbr.rel (0) target = $region80
    $region79: #{tpu_custom_call.1} parent=1 // pred_region
      %s586 = ssub.s32 32, 32
      %587 = vsyncadd [#allocation19], %s586
      %s589 = sshll.u32 [#allocation18], 4
      %s590 = int_to_ptr.vmem [resolvable:$true] %s589
      %592 = dma.vmem_to_hbm [thread:$0]  %s590, 32, %s12, [#allocation19]
    $region80: #{tpu_custom_call.1} parent=1 // pred_fallthru
      _
    // Predicated region
    $region81: #{tpu_custom_call.1} parent=1 // pred_check
      _
    $region82: #{tpu_custom_call.1} parent=1 // pred_check_branch
      %594 = sbr.rel (0) target = $region84
    $region83: #{tpu_custom_call.1} parent=1 // pred_region
      %595 = dma.done [#allocation4], 256
    $region84: #{tpu_custom_call.1} parent=1 // pred_fallthru
      _
    // Predicated region
    $region85: #{tpu_custom_call.1} parent=1 // pred_check
      _
    $region86: #{tpu_custom_call.1} parent=1 // pred_check_branch
      %597 = sbr.rel (0) target = $region88
    $region87: #{tpu_custom_call.1} parent=1 // pred_region
      %598 = dma.done [#allocation13], 256
    $region88: #{tpu_custom_call.1} parent=1 // pred_fallthru
      _
    // Predicated region
    $region89: #{tpu_custom_call.1} parent=1 // pred_check
      _
    $region90: #{tpu_custom_call.1} parent=1 // pred_check_branch
      %600 = sbr.rel (0) target = $region92
    $region91: #{tpu_custom_call.1} parent=1 // pred_region
      %601 = dma.done [#allocation13], 32
    $region92: #{tpu_custom_call.1} parent=1 // pred_fallthru
      _
    // Predicated region
    $region93: #{tpu_custom_call.1} parent=1 // pred_check
      _
    $region94: #{tpu_custom_call.1} parent=1 // pred_check_branch
      %603 = sbr.rel (0) target = $region96
    $region95: #{tpu_custom_call.1} parent=1 // pred_region
      %604 = dma.done [#allocation16], 32
    $region96: #{tpu_custom_call.1} parent=1 // pred_fallthru
      _
    // Predicated region
    $region97: #{tpu_custom_call.1} parent=1 // pred_check
      _
    $region98: #{tpu_custom_call.1} parent=1 // pred_check_branch
      %606 = sbr.rel (0) target = $region100
    $region99: #{tpu_custom_call.1} parent=1 // pred_region
      %607 = dma.done [#allocation16], 32
    $region100: #{tpu_custom_call.1} parent=1 // pred_fallthru
      _
    // Predicated region
    $region101: #{tpu_custom_call.1} parent=1 // pred_check
      _
    $region102: #{tpu_custom_call.1} parent=1 // pred_check_branch
      %609 = sbr.rel (0) target = $region104
    $region103: #{tpu_custom_call.1} parent=1 // pred_region
      %610 = dma.done [#allocation19], 32
    $region104: #{tpu_custom_call.1} parent=1 // pred_fallthru
      _
    %611 = vsyncpa [#allocation3], 1
    %612 = vsyncpa [#allocation6], 1
    %613 = vsyncpa [#allocation9], 1
    %614 = vsyncpa [#allocation4], 1
    %615 = vsyncpa [#allocation13], 1
    %616 = vsyncpa [#allocation16], 1
    %617 = vsyncpa [#allocation19], 1

</llo_original>
